<compile_context>
chip_gen: v7x
topology: tpu7x:2x2x1
jax: 0.10.0
libtpu: 0.0.40
codegen_flags: <defaults>
</compile_context>

<pallas_src>
import functools

import numpy as np
import jax
import jax.numpy as jnp
from jax.experimental import pallas as pl
from jax.experimental.pallas import tpu as pltpu

NCONP = 3

# ---- deterministic "parameters" (match the PyTorch module constants) -------
L_MAT = np.array([0.1, 0.2, 0.3, -0.5, -0.9, 1.0, -0.1, 0.4, 0.8],
                 dtype=np.float32).reshape(NCONP, NCONP)
LAM = np.array([1.0, 1.0, -1.0], dtype=np.float32)
R_MAT = np.linalg.inv(L_MAT.astype(np.float64)).astype(np.float32)

GRID_SIZE = 200
XE, XS = 0.5, -0.5
DX = (XE - XS) / GRID_SIZE

# Fold the PyTorch triple loop over (i, j, k) into two 3x3 matrices:
#   Rur[:, k, :] = sum_j A_MINUS[k, j] * (ur - u)[:, j, :]
#   Rul[:, k, :] = sum_j A_PLUS [k, j] * (u - ul)[:, j, :]
A_MINUS = np.einsum('i,ij,ki->kj', LAM - np.abs(LAM), L_MAT, R_MAT).astype(np.float32)
A_PLUS = np.einsum('i,ij,ki->kj', LAM + np.abs(LAM), L_MAT, R_MAT).astype(np.float32)

TARGET_BLOCK_PAYLOAD = 2 * 1024 * 1024   # ~2 MiB of real in+out bytes per grid step
MAX_BATCH_BLOCK = 1024                   # hard cap on batch rows per block
PALLAS_MIN_ELEMS = 1 << 16               # below this a fused XLA pass wins


def roe_kernel(u_ref, out_ref, *, cm, cp):
    """Channel-leading blocks: u_ref / out_ref are (NCONP, bb, L) in VMEM.

    cm / cp are nested tuples of Python floats holding -A_MINUS/(2dx) and
    -A_PLUS/(2dx); they enter the kernel as immediate scalar constants
    (no captured arrays, no SMEM operands).
    """
    u = u_ref[...]                                       # (3, bb, L) f32

    # One forward difference du[:, :, x] = u[x+1] - u[x] (width L-1), shared by
    # both one-sided differences.  Edge replication in the reference makes the
    # boundary terms exactly zero, so append/prepend a zero column instead of
    # roll + iota/mask.
    du = u[:, :, 1:] - u[:, :, :-1]                      # (3, bb, L-1)
    zcol = jnp.zeros(du.shape[:2] + (1,), dtype=du.dtype)
    dur = jnp.concatenate([du, zcol], axis=2)            # u[x+1]-u[x], 0 at x=L-1
    dul = jnp.concatenate([zcol, du], axis=2)            # u[x]-u[x-1], 0 at x=0

    # 3x3 channel mix as scalar-constant FMAs over whole (bb, L) slabs.
    # Deliberately VPU-only (NOT jnp.dot / MXU).
    for k in range(NCONP):
        acc = cm[k][0] * dur[0] + cp[k][0] * dul[0]
        for j in range(1, NCONP):
            acc = acc + cm[k][j] * dur[j] + cp[k][j] * dul[j]
        out_ref[k] = acc.astype(out_ref.dtype)           # (bb, L) slab store


def _pick_batch_block(batch, length, itemsize=4):
    """Batch rows per grid step.

    Big enough to amortize per-step pipeline overhead (~2 MiB of real in+out
    payload), a multiple of 8 (sublane axis), capped so double-buffered in+out
    stays far below every generation's scoped-VMEM default, and split into
    >= 2 grid steps whenever possible (v7x megacore).
    """
    per_row = 2 * NCONP * length * itemsize              # in + out bytes per batch row
    target = max(8, TARGET_BLOCK_PAYLOAD // per_row)
    target = min(target, MAX_BATCH_BLOCK)
    if batch < 16:
        return batch                                     # single full-extent block
    bb = min(target, batch // 2)                         # >= 2 grid steps
    return max(8, (bb // 8) * 8)                         # sublane multiple of 8


def roe_reference(u, dx=DX):
    """Pure-JAX replica of the PyTorch forward (also the tiny-input fast path)."""
    ul = jnp.concatenate([u[:, :, :1], u[:, :, :-1]], axis=2)
    ur = jnp.concatenate([u[:, :, 1:], u[:, :, -1:]], axis=2)
    rur = jnp.einsum('kj,bjx->bkx', jnp.asarray(A_MINUS, dtype=u.dtype), ur - u)
    rul = jnp.einsum('kj,bjx->bkx', jnp.asarray(A_PLUS, dtype=u.dtype), u - ul)
    return -(rur + rul) / (2.0 * dx)


def roe_forward_channel_first(ut, dx=DX):
    """Pallas path. ut: (NCONP, B, L) channel-leading; returns the same layout.

    Time-stepping callers should keep u persistently in this layout and call
    this function directly so the transposes in roe_forward are never paid.
    """
    C, B, Lg = ut.shape
    assert C == NCONP

    # Fold -1/(2*dx) into the constant mixing matrices (f64 math, single cast).
    scale = -1.0 / (2.0 * float(dx))
    cm = tuple(map(tuple,
                   (A_MINUS.astype(np.float64) * scale).astype(np.float32).tolist()))
    cp = tuple(map(tuple,
                   (A_PLUS.astype(np.float64) * scale).astype(np.float32).tolist()))

    bb = _pick_batch_block(B, Lg, np.dtype(ut.dtype).itemsize)
    grid = (pl.cdiv(B, bb),)

    kernel = functools.partial(roe_kernel, cm=cm, cp=cp)
    return pl.pallas_call(
        kernel,
        out_shape=jax.ShapeDtypeStruct((C, B, Lg), ut.dtype),
        grid=grid,
        in_specs=[pl.BlockSpec((C, bb, Lg), lambda i: (0, i, 0))],
        out_specs=pl.BlockSpec((C, bb, Lg), lambda i: (0, i, 0)),
        compiler_params=pltpu.CompilerParams(
            dimension_semantics=("parallel",),
            # covers 2 arrays x 2 pipeline buffers with headroom; fits the
            # 16 MiB (v5e) / 32 MiB (v6e, v7x) default scoped budgets too.
            vmem_limit_bytes=32 * 1024 * 1024),
    )(ut)


def roe_forward(u, dx=DX, *, force_pallas=False):
    """Matches Roe.forward on (B, NCONP, L) inputs."""
    B, C, Lg = u.shape
    assert C == NCONP
    if not force_pallas and u.size < PALLAS_MIN_ELEMS:
        # Tiny inputs: one fused XLA pass beats the pallas_call fixed cost.
        return roe_reference(u, dx)
    # Channel-leading layout so batch rides sublanes and L rides lanes.
    ut = jnp.transpose(u, (1, 0, 2))
    out_t = roe_forward_channel_first(ut, dx)
    return jnp.transpose(out_t, (1, 0, 2))


if __name__ == "__main__":
    key = jax.random.PRNGKey(0)
    batch = 2
    u = jax.random.normal(key, (batch, NCONP, GRID_SIZE), dtype=jnp.float32)

    # force_pallas=True so the demo actually exercises the kernel even at this
    # tiny size (production callers at this size take the fused XLA path).
    out = jax.block_until_ready(roe_forward(u, force_pallas=True))

    ref = jax.block_until_ready(roe_reference(u))
    assert out.shape == (batch, NCONP, GRID_SIZE)
    np.testing.assert_allclose(np.asarray(out), np.asarray(ref), rtol=1e-4, atol=1e-4)

    print("KERNEL_OK")
</pallas_src>

<mosaic_0001>
module attributes {stable_mosaic.version = 11 : i64} {
  func.func @roe_kernel(%arg0: i32, %arg1: memref<3x2x200xf32, #tpu.memory_space<vmem>>, %arg2: memref<3x2x200xf32, #tpu.memory_space<vmem>>) attributes {dimension_semantics = [#tpu.dimension_semantics<parallel>], iteration_bounds = array<i64: 1>, scalar_prefetch = 0 : i64, scratch_operands = 0 : i64, tpu.core_type = #tpu.core_type<tc>, window_params = [{transform_indices = @transform_0, window_bounds = array<i64: 3, 2, 200>}, {transform_indices = @transform_1, window_bounds = array<i64: 3, 2, 200>}]} {
    %c0 = arith.constant 0 : index
    %c0_0 = arith.constant 0 : index
    %c0_1 = arith.constant 0 : index
    %0 = vector.load %arg1[%c0, %c0_0, %c0_1] : memref<3x2x200xf32, #tpu.memory_space<vmem>>, vector<3x2x200xf32>
    %1 = vector.extract_strided_slice %0 {offsets = [0, 0, 1], sizes = [3, 2, 199], strides = [1, 1, 1]} : vector<3x2x200xf32> to vector<3x2x199xf32>
    %2 = vector.extract_strided_slice %0 {offsets = [0, 0, 0], sizes = [3, 2, 199], strides = [1, 1, 1]} : vector<3x2x200xf32> to vector<3x2x199xf32>
    %3 = arith.subf %1, %2 : vector<3x2x199xf32>
    %cst = arith.constant 0.000000e+00 : f32
    %4 = vector.broadcast %cst : f32 to vector<3x2x1xf32>
    %5 = tpu.concatenate %3, %4 in 2 : vector<3x2x199xf32>, vector<3x2x1xf32> -> vector<3x2x200xf32>
    %6 = tpu.concatenate %4, %3 in 2 : vector<3x2x1xf32>, vector<3x2x199xf32> -> vector<3x2x200xf32>
    %7 = vector.extract_strided_slice %5 {offsets = [0, 0, 0], sizes = [1, 2, 200], strides = [1, 1, 1]} : vector<3x2x200xf32> to vector<1x2x200xf32>
    %8 = vector.shape_cast %7 : vector<1x2x200xf32> to vector<2x200xf32>
    %cst_2 = arith.constant 6.762590e+01 : f32
    %9 = vector.broadcast %cst_2 : f32 to vector<2x200xf32>
    %10 = arith.mulf %9, %8 : vector<2x200xf32>
    %11 = vector.extract_strided_slice %6 {offsets = [0, 0, 0], sizes = [1, 2, 200], strides = [1, 1, 1]} : vector<3x2x200xf32> to vector<1x2x200xf32>
    %12 = vector.shape_cast %11 : vector<1x2x200xf32> to vector<2x200xf32>
    %cst_3 = arith.constant -132.374084 : f32
    %13 = vector.broadcast %cst_3 : f32 to vector<2x200xf32>
    %14 = arith.mulf %13, %12 : vector<2x200xf32>
    %15 = arith.addf %10, %14 : vector<2x200xf32>
    %16 = vector.extract_strided_slice %5 {offsets = [1, 0, 0], sizes = [1, 2, 200], strides = [1, 1, 1]} : vector<3x2x200xf32> to vector<1x2x200xf32>
    %17 = vector.shape_cast %16 : vector<1x2x200xf32> to vector<2x200xf32>
    %cst_4 = arith.constant -270.503601 : f32
    %18 = vector.broadcast %cst_4 : f32 to vector<2x200xf32>
    %19 = arith.mulf %18, %17 : vector<2x200xf32>
    %20 = arith.addf %15, %19 : vector<2x200xf32>
    %21 = vector.extract_strided_slice %6 {offsets = [1, 0, 0], sizes = [1, 2, 200], strides = [1, 1, 1]} : vector<3x2x200xf32> to vector<1x2x200xf32>
    %22 = vector.shape_cast %21 : vector<1x2x200xf32> to vector<2x200xf32>
    %cst_5 = arith.constant -270.503571 : f32
    %23 = vector.broadcast %cst_5 : f32 to vector<2x200xf32>
    %24 = arith.mulf %23, %22 : vector<2x200xf32>
    %25 = arith.addf %20, %24 : vector<2x200xf32>
    %26 = vector.extract_strided_slice %5 {offsets = [2, 0, 0], sizes = [1, 2, 200], strides = [1, 1, 1]} : vector<3x2x200xf32> to vector<1x2x200xf32>
    %27 = vector.shape_cast %26 : vector<1x2x200xf32> to vector<2x200xf32>
    %cst_6 = arith.constant -541.007202 : f32
    %28 = vector.broadcast %cst_6 : f32 to vector<2x200xf32>
    %29 = arith.mulf %28, %27 : vector<2x200xf32>
    %30 = arith.addf %25, %29 : vector<2x200xf32>
    %31 = vector.extract_strided_slice %6 {offsets = [2, 0, 0], sizes = [1, 2, 200], strides = [1, 1, 1]} : vector<3x2x200xf32> to vector<1x2x200xf32>
    %32 = vector.shape_cast %31 : vector<1x2x200xf32> to vector<2x200xf32>
    %cst_7 = arith.constant -541.007202 : f32
    %33 = vector.broadcast %cst_7 : f32 to vector<2x200xf32>
    %34 = arith.mulf %33, %32 : vector<2x200xf32>
    %35 = arith.addf %30, %34 : vector<2x200xf32>
    %c0_8 = arith.constant 0 : index
    %c0_9 = arith.constant 0 : index
    %c0_10 = arith.constant 0 : index
    %36 = vector.load %arg2[%c0_8, %c0_9, %c0_10] : memref<3x2x200xf32, #tpu.memory_space<vmem>>, vector<1x2x200xf32>
    %37 = vector.shape_cast %36 : vector<1x2x200xf32> to vector<2x200xf32>
    %38 = vector.shape_cast %35 : vector<2x200xf32> to vector<1x2x200xf32>
    tpu.vector_store %arg2[%c0_8, %c0_9, %c0_10], %38 {strides = array<i32>} : memref<3x2x200xf32, #tpu.memory_space<vmem>>, vector<1x2x200xf32>,
    %39 = vector.extract_strided_slice %5 {offsets = [0, 0, 0], sizes = [1, 2, 200], strides = [1, 1, 1]} : vector<3x2x200xf32> to vector<1x2x200xf32>
    %40 = vector.shape_cast %39 : vector<1x2x200xf32> to vector<2x200xf32>
    %cst_11 = arith.constant -35.9712257 : f32
    %41 = vector.broadcast %cst_11 : f32 to vector<2x200xf32>
    %42 = arith.mulf %41, %40 : vector<2x200xf32>
    %43 = vector.extract_strided_slice %6 {offsets = [0, 0, 0], sizes = [1, 2, 200], strides = [1, 1, 1]} : vector<3x2x200xf32> to vector<1x2x200xf32>
    %44 = vector.shape_cast %43 : vector<1x2x200xf32> to vector<2x200xf32>
    %cst_12 = arith.constant -35.9712257 : f32
    %45 = vector.broadcast %cst_12 : f32 to vector<2x200xf32>
    %46 = arith.mulf %45, %44 : vector<2x200xf32>
    %47 = arith.addf %42, %46 : vector<2x200xf32>
    %48 = vector.extract_strided_slice %5 {offsets = [1, 0, 0], sizes = [1, 2, 200], strides = [1, 1, 1]} : vector<3x2x200xf32> to vector<1x2x200xf32>
    %49 = vector.shape_cast %48 : vector<1x2x200xf32> to vector<2x200xf32>
    %cst_13 = arith.constant 143.884903 : f32
    %50 = vector.broadcast %cst_13 : f32 to vector<2x200xf32>
    %51 = arith.mulf %50, %49 : vector<2x200xf32>
    %52 = arith.addf %47, %51 : vector<2x200xf32>
    %53 = vector.extract_strided_slice %6 {offsets = [1, 0, 0], sizes = [1, 2, 200], strides = [1, 1, 1]} : vector<3x2x200xf32> to vector<1x2x200xf32>
    %54 = vector.shape_cast %53 : vector<1x2x200xf32> to vector<2x200xf32>
    %cst_14 = arith.constant -56.1151047 : f32
    %55 = vector.broadcast %cst_14 : f32 to vector<2x200xf32>
    %56 = arith.mulf %55, %54 : vector<2x200xf32>
    %57 = arith.addf %52, %56 : vector<2x200xf32>
    %58 = vector.extract_strided_slice %5 {offsets = [2, 0, 0], sizes = [1, 2, 200], strides = [1, 1, 1]} : vector<3x2x200xf32> to vector<1x2x200xf32>
    %59 = vector.shape_cast %58 : vector<1x2x200xf32> to vector<2x200xf32>
    %cst_15 = arith.constant 287.769806 : f32
    %60 = vector.broadcast %cst_15 : f32 to vector<2x200xf32>
    %61 = arith.mulf %60, %59 : vector<2x200xf32>
    %62 = arith.addf %57, %61 : vector<2x200xf32>
    %63 = vector.extract_strided_slice %6 {offsets = [2, 0, 0], sizes = [1, 2, 200], strides = [1, 1, 1]} : vector<3x2x200xf32> to vector<1x2x200xf32>
    %64 = vector.shape_cast %63 : vector<1x2x200xf32> to vector<2x200xf32>
    %cst_16 = arith.constant 287.769806 : f32
    %65 = vector.broadcast %cst_16 : f32 to vector<2x200xf32>
    %66 = arith.mulf %65, %64 : vector<2x200xf32>
    %67 = arith.addf %62, %66 : vector<2x200xf32>
    %c1 = arith.constant 1 : index
    %c0_17 = arith.constant 0 : index
    %c0_18 = arith.constant 0 : index
    %68 = vector.load %arg2[%c1, %c0_17, %c0_18] : memref<3x2x200xf32, #tpu.memory_space<vmem>>, vector<1x2x200xf32>
    %69 = vector.shape_cast %68 : vector<1x2x200xf32> to vector<2x200xf32>
    %70 = vector.shape_cast %67 : vector<2x200xf32> to vector<1x2x200xf32>
    tpu.vector_store %arg2[%c1, %c0_17, %c0_18], %70 {strides = array<i32>} : memref<3x2x200xf32, #tpu.memory_space<vmem>>, vector<1x2x200xf32>,
    %71 = vector.extract_strided_slice %5 {offsets = [0, 0, 0], sizes = [1, 2, 200], strides = [1, 1, 1]} : vector<3x2x200xf32> to vector<1x2x200xf32>
    %72 = vector.shape_cast %71 : vector<1x2x200xf32> to vector<2x200xf32>
    %cst_19 = arith.constant 1.43884933 : f32
    %73 = vector.broadcast %cst_19 : f32 to vector<2x200xf32>
    %74 = arith.mulf %73, %72 : vector<2x200xf32>
    %75 = vector.extract_strided_slice %6 {offsets = [0, 0, 0], sizes = [1, 2, 200], strides = [1, 1, 1]} : vector<3x2x200xf32> to vector<1x2x200xf32>
    %76 = vector.shape_cast %75 : vector<1x2x200xf32> to vector<2x200xf32>
    %cst_20 = arith.constant 1.43885016 : f32
    %77 = vector.broadcast %cst_20 : f32 to vector<2x200xf32>
    %78 = arith.mulf %77, %76 : vector<2x200xf32>
    %79 = arith.addf %74, %78 : vector<2x200xf32>
    %80 = vector.extract_strided_slice %5 {offsets = [1, 0, 0], sizes = [1, 2, 200], strides = [1, 1, 1]} : vector<3x2x200xf32> to vector<1x2x200xf32>
    %81 = vector.shape_cast %80 : vector<1x2x200xf32> to vector<2x200xf32>
    %cst_21 = arith.constant -5.75539732 : f32
    %82 = vector.broadcast %cst_21 : f32 to vector<2x200xf32>
    %83 = arith.mulf %82, %81 : vector<2x200xf32>
    %84 = arith.addf %79, %83 : vector<2x200xf32>
    %85 = vector.extract_strided_slice %6 {offsets = [1, 0, 0], sizes = [1, 2, 200], strides = [1, 1, 1]} : vector<3x2x200xf32> to vector<1x2x200xf32>
    %86 = vector.shape_cast %85 : vector<1x2x200xf32> to vector<2x200xf32>
    %cst_22 = arith.constant -5.75539494 : f32
    %87 = vector.broadcast %cst_22 : f32 to vector<2x200xf32>
    %88 = arith.mulf %87, %86 : vector<2x200xf32>
    %89 = arith.addf %84, %88 : vector<2x200xf32>
    %90 = vector.extract_strided_slice %5 {offsets = [2, 0, 0], sizes = [1, 2, 200], strides = [1, 1, 1]} : vector<3x2x200xf32> to vector<1x2x200xf32>
    %91 = vector.shape_cast %90 : vector<1x2x200xf32> to vector<2x200xf32>
    %cst_23 = arith.constant -11.5107946 : f32
    %92 = vector.broadcast %cst_23 : f32 to vector<2x200xf32>
    %93 = arith.mulf %92, %91 : vector<2x200xf32>
    %94 = arith.addf %89, %93 : vector<2x200xf32>
    %95 = vector.extract_strided_slice %6 {offsets = [2, 0, 0], sizes = [1, 2, 200], strides = [1, 1, 1]} : vector<3x2x200xf32> to vector<1x2x200xf32>
    %96 = vector.shape_cast %95 : vector<1x2x200xf32> to vector<2x200xf32>
    %cst_24 = arith.constant -211.510803 : f32
    %97 = vector.broadcast %cst_24 : f32 to vector<2x200xf32>
    %98 = arith.mulf %97, %96 : vector<2x200xf32>
    %99 = arith.addf %94, %98 : vector<2x200xf32>
    %c2 = arith.constant 2 : index
    %c0_25 = arith.constant 0 : index
    %c0_26 = arith.constant 0 : index
    %100 = vector.load %arg2[%c2, %c0_25, %c0_26] : memref<3x2x200xf32, #tpu.memory_space<vmem>>, vector<1x2x200xf32>
    %101 = vector.shape_cast %100 : vector<1x2x200xf32> to vector<2x200xf32>
    %102 = vector.shape_cast %99 : vector<2x200xf32> to vector<1x2x200xf32>
    tpu.vector_store %arg2[%c2, %c0_25, %c0_26], %102 {strides = array<i32>} : memref<3x2x200xf32, #tpu.memory_space<vmem>>, vector<1x2x200xf32>,
    return
  }
  func.func @transform_0(%arg0: i32) -> (i32, i32, i32) {
    %c0_i32 = arith.constant 0 : i32
    %c0_i32_0 = arith.constant 0 : i32
    %c0_i32_1 = arith.constant 0 : i32
    return %c0_i32, %arg0, %c0_i32_0 : i32, i32, i32
  }
  func.func @transform_1(%arg0: i32) -> (i32, i32, i32) {
    %c0_i32 = arith.constant 0 : i32
    %c0_i32_0 = arith.constant 0 : i32
    %c0_i32_1 = arith.constant 0 : i32
    return %c0_i32, %arg0, %c0_i32_0 : i32, i32, i32
  }
}

</mosaic_0001>

<llo_original>
// kernel: tpu_custom_call.1
$region0: #{tpu_custom_call.1}
  #allocation0 [shape = 'u32[]', space=smem, size = 0x4, offset = 0x4, fixed_abs, tag = 'smem constant byte address 0x4 - core index']
  #allocation1 [shape = 'u32[144,128]{1,0:T(1,128)}', space=vmem, size = 0x12000, scoped, tag = 'internal scratch']
  %s0 = inlined_call_operand.hbm [shape: f32[3,2,200], index: 0, kind: input, shape index: {}]
  %s1 = inlined_call_operand.hbm [shape: f32[3,2,200], index: 1, kind: output, shape index: {}]
  %s2 = sld [smem:[#allocation0]]
  $region18: #{tpu_custom_call.1} parent=0
    _
  %s4 = ssub.s32 1, %s2
  %s5 = scalar_select 0, %s4, %s2
  $region1: #{tpu_custom_call.1} parent=0
    #allocation2 [shape = 'u8[6144]{0}', space=vmem, size = 0x1800, scoped, tag = 'input window, operand 0, single buffered']
    #allocation3 [shape = 's32[1]{0}', space=sflag, size = 0x4, scoped, tag = 'scoped memory for tpu_custom_call.1']
    #allocation4 [shape = 's32[1]{0}', space=sflag, size = 0x4, scoped, tag = 'scoped memory for tpu_custom_call.1']
    #allocation5 [shape = 'u8[6144]{0}', space=vmem, size = 0x1800, scoped, tag = 'output window, operand 0, single buffered']
    %6 = vsyncpa [#allocation3], 0
    %7 = vsyncpa [#allocation4], 0
    // Predicated region
    $region2: #{tpu_custom_call.1} parent=1 // pred_check
      _
    $region3: #{tpu_custom_call.1} parent=1 // pred_check_branch
      %9 = sbr.rel (0) target = $region5
    $region4: #{tpu_custom_call.1} parent=1 // pred_region
      %s11 = ssub.s32 192, 192
      %12 = vsyncadd [#allocation3], %s11
      %s13 = sshll.u32 [#allocation2], 4
      %s14 = int_to_ptr.vmem [resolvable:$true] %s13
      %19 = dma.hbm_to_vmem [thread:$0]  %s0, 192, %s14, [#allocation3], 64, 64, 4
    $region5: #{tpu_custom_call.1} parent=1 // pred_fallthru
      _
    // Predicated region
    $region6: #{tpu_custom_call.1} parent=1 // pred_check
      _
    $region7: #{tpu_custom_call.1} parent=1 // pred_check_branch
      %21 = sbr.rel (0) target = $region9
    $region8: #{tpu_custom_call.1} parent=1 // pred_region
      %22 = dma.done [#allocation3], 192
    $region9: #{tpu_custom_call.1} parent=1 // pred_fallthru
      _
    %v23 = vld [vmem:[#allocation2] sm:$0xf]
    %v24 = vld [vmem:[#allocation2 + $0x4] sm:$0xf]
    %v25 = vld [vmem:[#allocation2 + $0x8] sm:$0xf]
    %29 = vrot.lane.b32.xlu0 %v23, 1
    %v30 = vpop.permute.xlu0 %29
    %31 = vrot.lane.b32.xlu0 %v24, 1
    %v32 = vpop.permute.xlu0 %31
    %33 = vrot.lane.b32.xlu0 %v25, 1
    %v34 = vpop.permute.xlu0 %33
    %v35 = vrot.slane %v30, 6
    %v36 = vrot.slane %v32, 6
    %v37 = vrot.slane %v34, 6
    %vm38 = vcmask 7168
    %v39 = vsel %vm38, %v35, %v30
    %v40 = vsel %vm38, %v36, %v32
    %v41 = vsel %vm38, %v37, %v34
    %v45 = vsub.f32 %v23, %v39
    %v46 = vsub.f32 %v24, %v40
    %v47 = vsub.f32 %v25, %v41
    %v52 = vunpack.c.l.s4 1983009808
    %v53 = vunpack.c.0.s8 %v52
    %v54 = vlaneseq
    %v55 = vshrl.u32 %v54, 7
    %v56 = vsub.s32 %v53, %v55
    %v57 = vrot.slane %v45, %v56
    %v58 = vcombine.high %v57, %v57
    %v60 = vunpack.c.l.s4 1983009808
    %v61 = vunpack.c.0.s8 %v60
    %v62 = vlaneseq
    %v63 = vshrl.u32 %v62, 7
    %v64 = vsub.s32 %v61, %v63
    %v65 = vrot.slane %v46, %v64
    %v66 = vcombine.high %v65, %v65
    %v68 = vunpack.c.l.s4 1983009808
    %v69 = vunpack.c.0.s8 %v68
    %v70 = vlaneseq
    %v71 = vshrl.u32 %v70, 7
    %v72 = vsub.s32 %v69, %v71
    %v73 = vrot.slane %v47, %v72
    %v74 = vcombine.high %v73, %v73
    %75 = vrot.lane.b32.xlu0 %v57, 127
    %v76 = vpop.permute.xlu0 %75
    %77 = vrot.lane.b32.xlu0 %v58, 127
    %v78 = vpop.permute.xlu0 %77
    %79 = vrot.lane.b32.xlu0 %v65, 127
    %v80 = vpop.permute.xlu0 %79
    %81 = vrot.lane.b32.xlu0 %v66, 127
    %v82 = vpop.permute.xlu0 %81
    %83 = vrot.lane.b32.xlu0 %v73, 127
    %v84 = vpop.permute.xlu0 %83
    %85 = vrot.lane.b32.xlu0 %v74, 127
    %v86 = vpop.permute.xlu0 %85
    %vm87 = vcmask 1039360
    %v88 = vsel %vm87, %v76, %v78
    %v89 = vsel %vm87, %v80, %v82
    %v90 = vsel %vm87, %v84, %v86
    %vm97 = vcmask 580608
    %v98 = vsel %vm97, %v78, 0.0
    %v99 = vsel %vm97, %v82, 0.0
    %v100 = vsel %vm97, %v86, 0.0
    %v107 = vsel %vm38, 0.0, %v57
    %v108 = vsel %vm38, 0.0, %v65
    %v109 = vsel %vm38, 0.0, %v73
    %v110 = vmul.f32 %v88, 67.6259
    %v111 = vmul.f32 %v98, 67.6259
    %v112 = vmul.f32 %v107, -132.37408
    %v113 = vmul.f32 %v58, -132.37408
    %v114 = vadd.f32 %v110, %v112
    %v115 = vadd.f32 %v111, %v113
    %v116 = vmul.f32 %v89, -270.5036
    %v117 = vmul.f32 %v99, -270.5036
    %v118 = vadd.f32 %v114, %v116
    %v119 = vadd.f32 %v115, %v117
    %v120 = vmul.f32 %v108, -270.50357
    %v121 = vmul.f32 %v66, -270.50357
    %v122 = vadd.f32 %v118, %v120
    %v123 = vadd.f32 %v119, %v121
    %v124 = vmul.f32 %v90, -541.0072
    %v125 = vmul.f32 %v100, -541.0072
    %v126 = vadd.f32 %v122, %v124
    %v127 = vadd.f32 %v123, %v125
    %v128 = vmul.f32 %v109, -541.0072
    %v129 = vmul.f32 %v74, -541.0072
    %v130 = vadd.f32 %v126, %v128
    %v131 = vadd.f32 %v127, %v129
    %v134 = vcombine.low %v130, %v131
    %v136 = vunpack.c.l.s4 1983009808
    %v137 = vunpack.c.0.s8 %v136
    %v138 = vlaneseq
    %v139 = vshrl.u32 %v138, 7
    %v140 = vsub.s32 %v137, %v139
    %v141 = vrot.slane %v134, %v140
    %vm143 = vcmask 1041408
    %vm144 = vcmask 584706
    %vm145 = vmor %vm144, %vm143
    %146 = vst.msk [vmem:[#allocation5] sm:$0xf] %vm145, %v141
    %v147 = vmul.f32 %v88, -35.971226
    %v148 = vmul.f32 %v98, -35.971226
    %v149 = vmul.f32 %v107, -35.971226
    %v150 = vmul.f32 %v58, -35.971226
    %v151 = vadd.f32 %v147, %v149
    %v152 = vadd.f32 %v148, %v150
    %v153 = vmul.f32 %v89, 143.8849
    %v154 = vmul.f32 %v99, 143.8849
    %v155 = vadd.f32 %v151, %v153
    %v156 = vadd.f32 %v152, %v154
    %v157 = vmul.f32 %v108, -56.115105
    %v158 = vmul.f32 %v66, -56.115105
    %v159 = vadd.f32 %v155, %v157
    %v160 = vadd.f32 %v156, %v158
    %v161 = vmul.f32 %v90, 287.7698
    %v162 = vmul.f32 %v100, 287.7698
    %v163 = vadd.f32 %v159, %v161
    %v164 = vadd.f32 %v160, %v162
    %v165 = vmul.f32 %v109, 287.7698
    %v166 = vmul.f32 %v74, 287.7698
    %v167 = vadd.f32 %v163, %v165
    %v168 = vadd.f32 %v164, %v166
    %v171 = vcombine.low %v167, %v168
    %v173 = vunpack.c.l.s4 1983009808
    %v174 = vunpack.c.0.s8 %v173
    %v175 = vlaneseq
    %v176 = vshrl.u32 %v175, 7
    %v177 = vsub.s32 %v174, %v176
    %v178 = vrot.slane %v171, %v177
    %s180 = scalar_lea.vmem [#allocation5], 4
    %181 = vst.msk [vmem:[%s180] sm:$0xf] %vm145, %v178
    %v182 = vmul.f32 %v88, 1.4388493
    %v183 = vmul.f32 %v98, 1.4388493
    %v184 = vmul.f32 %v107, 1.4388502
    %v185 = vmul.f32 %v58, 1.4388502
    %v186 = vadd.f32 %v182, %v184
    %v187 = vadd.f32 %v183, %v185
    %v188 = vmul.f32 %v89, -5.7553973
    %v189 = vmul.f32 %v99, -5.7553973
    %v190 = vadd.f32 %v186, %v188
    %v191 = vadd.f32 %v187, %v189
    %v192 = vmul.f32 %v108, -5.755395
    %v193 = vmul.f32 %v66, -5.755395
    %v194 = vadd.f32 %v190, %v192
    %v195 = vadd.f32 %v191, %v193
    %v196 = vmul.f32 %v90, -11.510795
    %v197 = vmul.f32 %v100, -11.510795
    %v198 = vadd.f32 %v194, %v196
    %v199 = vadd.f32 %v195, %v197
    %v200 = vmul.f32 %v109, -211.5108
    %v201 = vmul.f32 %v74, -211.5108
    %v202 = vadd.f32 %v198, %v200
    %v203 = vadd.f32 %v199, %v201
    %v206 = vcombine.low %v202, %v203
    %v208 = vunpack.c.l.s4 1983009808
    %v209 = vunpack.c.0.s8 %v208
    %v210 = vlaneseq
    %v211 = vshrl.u32 %v210, 7
    %v212 = vsub.s32 %v209, %v211
    %v213 = vrot.slane %v206, %v212
    %s215 = scalar_lea.vmem [#allocation5], 8
    %216 = vst.msk [vmem:[%s215] sm:$0xf] %vm145, %v213
    // Predicated region
    $region10: #{tpu_custom_call.1} parent=1 // pred_check
      _
    $region11: #{tpu_custom_call.1} parent=1 // pred_check_branch
      %218 = sbr.rel (0) target = $region13
    $region12: #{tpu_custom_call.1} parent=1 // pred_region
      %s220 = ssub.s32 192, 192
      %221 = vsyncadd [#allocation4], %s220
      %s222 = sshll.u32 [#allocation5], 4
      %s223 = int_to_ptr.vmem [resolvable:$true] %s222
      %228 = dma.vmem_to_hbm [thread:$0]  %s223, 192, %s1, [#allocation4], 64, 64, 4
    $region13: #{tpu_custom_call.1} parent=1 // pred_fallthru
      _
    // Predicated region
    $region14: #{tpu_custom_call.1} parent=1 // pred_check
      _
    $region15: #{tpu_custom_call.1} parent=1 // pred_check_branch
      %230 = sbr.rel (0) target = $region17
    $region16: #{tpu_custom_call.1} parent=1 // pred_region
      %231 = dma.done [#allocation4], 192
    $region17: #{tpu_custom_call.1} parent=1 // pred_fallthru
      _
    %232 = vsyncpa [#allocation3], 1
    %233 = vsyncpa [#allocation4], 1

</llo_original>
